<compile_context>
chip_gen: v7x
topology: tpu7x:2x2x1
jax: 0.10.0
libtpu: 0.0.40
codegen_flags: <defaults>
</compile_context>

<pallas_src>
import functools

import jax
import jax.numpy as jnp
from jax import lax
from jax.experimental import pallas as pl
from jax.experimental.pallas import tpu as pltpu


_LANE = 128
# Per-step INPUT block budgets (bytes).  Double-buffered input (2x) + output +
# weights (+ dropout temporaries) stay well inside the requested VMEM limit.
_EVAL_BLOCK_BUDGET = 4 * 1024 * 1024
_DROPOUT_BLOCK_BUDGET = 2 * 1024 * 1024
_VMEM_LIMIT_BYTES = 48 * 1024 * 1024     # < v7x 64 MiB physical; > v5e/v6e scoped defaults


def _round_up(v, m):
    return ((v + m - 1) // m) * m


# ----------------------------------------------------------------------------
# Kernels
# ----------------------------------------------------------------------------
def _conv1x1_kernel(x_ref, w_ref, o_ref):
    # x_ref: (1, Cin, TS) native dtype;  w_ref: (Cout, Cin) f32;  o_ref: (1, Cout, TS)
    y = jnp.dot(w_ref[...], x_ref[0], preferred_element_type=jnp.float32)
    o_ref[...] = y[None].astype(o_ref.dtype)


def _mix_u32(x):
    # "lowbias32" integer finalizer.  Pure per-lane VPU int ops -> lowers on both
    # Mosaic and CPU interpret mode (unlike pltpu.prng_*).
    x = x ^ (x >> 16)
    x = x * jnp.uint32(0x7FEB352D)
    x = x ^ (x >> 15)
    x = x * jnp.uint32(0x846CA68B)
    x = x ^ (x >> 16)
    return x


def _conv1x1_dropout_kernel(seed_ref, x_ref, w_ref, o_ref, *, rate):
    # Inverted dropout fused before the 1x1-conv matmul.  The 1/(1-rate) scale is
    # pre-folded into w by the wrapper, so per-element work is hash+cmp+select only.
    cin, ts = x_ref.shape[1], x_ref.shape[2]
    rows = lax.broadcasted_iota(jnp.uint32, (cin, ts), 0)
    cols = lax.broadcasted_iota(jnp.uint32, (cin, ts), 1)
    pid = pl.program_id(0) * pl.num_programs(1) + pl.program_id(1)
    key = _mix_u32(seed_ref[0].astype(jnp.uint32)
                   + pid.astype(jnp.uint32) * jnp.uint32(0x9E3779B1))
    bits = _mix_u32((rows * jnp.uint32(ts) + cols) * jnp.uint32(0x85EBCA77) + key)
    # Uniform test on the low 23 bits (granularity 2^-23 -- fine for p=0.5).
    thresh = jnp.uint32(int(rate * (1 << 23)))
    keep = (bits & jnp.uint32(0x7FFFFF)) >= thresh
    xd = jnp.where(keep, x_ref[0], jnp.zeros((), x_ref.dtype))
    y = jnp.dot(w_ref[...], xd, preferred_element_type=jnp.float32)
    o_ref[...] = y[None].astype(o_ref.dtype)


# ----------------------------------------------------------------------------
# Wrapper: 1x1 conv, no bias, NCHW in / NCHW out
# ----------------------------------------------------------------------------
def _pick_spatial_tile(hw, cin, itemsize, budget):
    """Largest lane-aligned spatial tile (<= hw) keeping the input block under budget."""
    if hw <= _LANE:
        return hw                                          # full extent: no (8,128) issue
    cap = max(_LANE, (budget // max(cin * itemsize, 1)) // _LANE * _LANE)
    return min(cap, (hw // _LANE) * _LANE)                 # multiple of 128, <= hw


def conv1x1_nobias(x, w, *, dropout_rate=None, dropout_seed=0):
    """x: (N, Cin, H, W), w: (Cout, Cin) or (Cout, Cin, 1, 1) -> (N, Cout, H, W)."""
    N, Cin, H, W = x.shape
    w2 = jnp.asarray(w, jnp.float32).reshape(w.shape[0], Cin)
    Cout = w2.shape[0]
    HW = H * W

    x2 = x.reshape(N, Cin, HW)                             # contiguous reshape, no HBM pass

    budget = _EVAL_BLOCK_BUDGET if dropout_rate is None else _DROPOUT_BLOCK_BUDGET
    ts = _pick_spatial_tile(HW, Cin, jnp.dtype(x.dtype).itemsize, budget)
    # v7x has 2 TensorCores: keep >=2 parallel grid steps when possible.
    if N == 1 and HW > _LANE and pl.cdiv(HW, ts) < 2:
        ts = _round_up((HW + 1) // 2, _LANE)
    grid = (N, pl.cdiv(HW, ts))                            # partial last block is masked

    x_spec = pl.BlockSpec((1, Cin, ts), lambda n, s, *_: (n, 0, s))
    w_spec = pl.BlockSpec((Cout, Cin), lambda n, s, *_: (0, 0))
    o_spec = pl.BlockSpec((1, Cout, ts), lambda n, s, *_: (n, 0, s))

    out_dtype = x.dtype
    cost = pl.CostEstimate(
        flops=2 * N * Cout * Cin * HW,
        transcendentals=0,
        bytes_accessed=(N * Cin * HW * jnp.dtype(x.dtype).itemsize
                        + Cout * Cin * 4
                        + N * Cout * HW * jnp.dtype(out_dtype).itemsize))

    if dropout_rate is None:
        kernel = _conv1x1_kernel
        num_prefetch = 0
        args = (x2, w2)
    else:
        rate = float(dropout_rate)
        kernel = functools.partial(_conv1x1_dropout_kernel, rate=rate)
        num_prefetch = 1
        seed = jnp.asarray([dropout_seed], dtype=jnp.int32)
        # Fold the inverted-dropout scale into the tiny weight, off the hot path.
        args = (seed, x2, w2 * jnp.float32(1.0 / (1.0 - rate)))

    y = pl.pallas_call(
        kernel,
        out_shape=jax.ShapeDtypeStruct((N, Cout, HW), out_dtype),
        grid_spec=pltpu.PrefetchScalarGridSpec(
            num_scalar_prefetch=num_prefetch,
            grid=grid,
            in_specs=[x_spec, w_spec],
            out_specs=o_spec,
        ),
        compiler_params=pltpu.CompilerParams(
            dimension_semantics=("parallel", "parallel"),
            vmem_limit_bytes=_VMEM_LIMIT_BYTES),
        cost_estimate=cost,
    )(*args)

    return y.reshape(N, Cout, H, W)


# ----------------------------------------------------------------------------
# NetLinLayer
# ----------------------------------------------------------------------------
class NetLinLayerPallas:
    """A single linear layer which does a 1x1 conv (no bias), optional dropout."""

    def __init__(self, chn_in, chn_out=1, use_dropout=False, *, key=None):
        if key is None:
            key = jax.random.PRNGKey(42)
        self.use_dropout = use_dropout
        # PyTorch Conv2d default init (kaiming_uniform_(a=sqrt(5)) for a 1x1 kernel):
        # U(-1/sqrt(fan_in), 1/sqrt(fan_in)).
        bound = float(chn_in) ** -0.5
        self.weight = jax.random.uniform(
            key, (chn_out, chn_in), jnp.float32, -bound, bound)

    def __call__(self, x, *, training=False, dropout_seed=0):
        # x: (N, Cin, H, W) NCHW.  nn.Dropout(p=0.5) is identity in eval mode.
        rate = 0.5 if (self.use_dropout and training) else None
        return conv1x1_nobias(x, self.weight,
                              dropout_rate=rate, dropout_seed=dropout_seed)


if __name__ == "__main__":
    key = jax.random.PRNGKey(0)
    x = jax.random.normal(key, (2, 4, 16, 16), jnp.float32)

    # Default config: no dropout -> exactly the 1x1 conv (f32 compute).
    layer = NetLinLayerPallas(chn_in=4, chn_out=1, use_dropout=False,
                              key=jax.random.PRNGKey(42))
    y = layer(x)
    jax.block_until_ready(y)
    assert y.shape == (2, 1, 16, 16)
    assert bool(jnp.all(jnp.isfinite(y)))

    ref = jnp.einsum("oc,nchw->nohw", layer.weight, x)
    assert bool(jnp.allclose(y, ref, rtol=2e-2, atol=2e-2))

    # Dropout layer in eval mode is identity + conv.
    layer_do = NetLinLayerPallas(chn_in=4, chn_out=2, use_dropout=True,
                                 key=jax.random.PRNGKey(7))
    y_eval = layer_do(x, training=False)
    ref_do = jnp.einsum("oc,nchw->nohw", layer_do.weight, x)
    assert bool(jnp.allclose(y_eval, ref_do, rtol=2e-2, atol=2e-2))

    # Exercise the fused training-mode dropout path.
    y_do = layer_do(x, training=True, dropout_seed=123)
    jax.block_until_ready(y_do)
    assert y_do.shape == (2, 2, 16, 16)
    assert bool(jnp.all(jnp.isfinite(y_do)))

    print("KERNEL_OK")
</pallas_src>

<mosaic_0001>
module attributes {stable_mosaic.version = 11 : i64} {
  func.func @_conv1x1_kernel(%arg0: i32, %arg1: i32, %arg2: memref<1x4x256xf32, #tpu.memory_space<vmem>>, %arg3: memref<1x4xf32, #tpu.memory_space<vmem>>, %arg4: memref<1x1x256xf32, #tpu.memory_space<vmem>>) attributes {dimension_semantics = [#tpu.dimension_semantics<parallel>, #tpu.dimension_semantics<parallel>], iteration_bounds = array<i64: 2, 1>, scalar_prefetch = 0 : i64, scratch_operands = 0 : i64, tpu.core_type = #tpu.core_type<tc>, window_params = [{transform_indices = @transform_0, window_bounds = array<i64: 1, 4, 256>}, {pipeline_mode = #tpu.pipeline_mode<synchronous>, transform_indices = @transform_1, window_bounds = array<i64: 1, 4>}, {transform_indices = @transform_2, window_bounds = array<i64: 1, 1, 256>}]} {
    %c0 = arith.constant 0 : index
    %c0_0 = arith.constant 0 : index
    %0 = vector.load %arg3[%c0, %c0_0] : memref<1x4xf32, #tpu.memory_space<vmem>>, vector<1x4xf32>
    %c0_1 = arith.constant 0 : index
    %c0_2 = arith.constant 0 : index
    %c0_3 = arith.constant 0 : index
    %1 = vector.load %arg2[%c0_1, %c0_2, %c0_3] : memref<1x4x256xf32, #tpu.memory_space<vmem>>, vector<1x4x256xf32>
    %2 = vector.shape_cast %1 : vector<1x4x256xf32> to vector<4x256xf32>
    %cst = arith.constant dense<0.000000e+00> : vector<1x256xf32>
    %3 = tpu.matmul %0, %2, %cst {dimension_numbers = #tpu.dot_dimension_numbers<[1], [0], [0], [1], [0, 0, 1, 1], [], []>} : vector<1x4xf32>, vector<4x256xf32>, vector<1x256xf32> -> vector<1x256xf32>
    %4 = vector.shape_cast %3 : vector<1x256xf32> to vector<1x1x256xf32>
    %c0_4 = arith.constant 0 : index
    %c0_5 = arith.constant 0 : index
    %c0_6 = arith.constant 0 : index
    %5 = vector.load %arg4[%c0_4, %c0_5, %c0_6] : memref<1x1x256xf32, #tpu.memory_space<vmem>>, vector<1x1x256xf32>
    tpu.vector_store %arg4[%c0_4, %c0_5, %c0_6], %4 {strides = array<i32>} : memref<1x1x256xf32, #tpu.memory_space<vmem>>, vector<1x1x256xf32>,
    return
  }
  func.func @transform_0(%arg0: i32, %arg1: i32) -> (i32, i32, i32) {
    %c0_i32 = arith.constant 0 : i32
    %c0_i32_0 = arith.constant 0 : i32
    return %arg0, %c0_i32, %arg1 : i32, i32, i32
  }
  func.func @transform_1(%arg0: i32, %arg1: i32) -> (i32, i32) {
    %c0_i32 = arith.constant 0 : i32
    %c0_i32_0 = arith.constant 0 : i32
    %c0_i32_1 = arith.constant 0 : i32
    return %c0_i32, %c0_i32_0 : i32, i32
  }
  func.func @transform_2(%arg0: i32, %arg1: i32) -> (i32, i32, i32) {
    %c0_i32 = arith.constant 0 : i32
    %c0_i32_0 = arith.constant 0 : i32
    return %arg0, %c0_i32, %arg1 : i32, i32, i32
  }
}

</mosaic_0001>

<llo_original>
// kernel: tpu_custom_call.1
$region0: #{tpu_custom_call.1}
  #allocation0 [shape = 'u32[]', space=smem, size = 0x4, offset = 0x4, fixed_abs, tag = 'smem constant byte address 0x4 - core index']
  #allocation1 [shape = 'u32[144,128]{1,0:T(1,128)}', space=vmem, size = 0x12000, scoped, tag = 'internal scratch']
  %s0 = inlined_call_operand.hbm [shape: f32[2,4,256], index: 0, kind: input, shape index: {}]
  %s1 = inlined_call_operand.vmem [shape: f32[1,4], index: 1, kind: input, shape index: {}]
  %s2 = inlined_call_operand.hbm [shape: f32[2,1,256], index: 2, kind: output, shape index: {}]
  %s3 = sld [smem:[#allocation0]]
  $region45: #{tpu_custom_call.1} parent=0
    _
  %s5 = ssub.s32 1, %s3
  %s6 = scalar_select 0, %s5, %s3
  $region1: #{tpu_custom_call.1} parent=0
    #allocation2 [shape = 'u8[8192]{0}', space=vmem, size = 0x2000, scoped, tag = 'input window, operand 0']
    #allocation3 [shape = 's32[2]{0}', space=sflag, size = 0x8, scoped, tag = 'scoped memory for tpu_custom_call.1']
    #allocation4 [shape = 's32[2]{0}', space=sflag, size = 0x8, scoped, tag = 'scoped memory for tpu_custom_call.1']
    #allocation5 [shape = 'u8[2048]{0}', space=vmem, size = 0x800, scoped, tag = 'output window, operand 0']
    %7 = vsyncpa [#allocation3], 0
    %s8 = scalar_lea.sflag [#allocation3], 1
    %9 = vsyncpa %s8, 0
    %10 = vsyncpa [#allocation4], 0
    %s11 = scalar_lea.sflag [#allocation4], 1
    %12 = vsyncpa %s11, 0
    loop: start=0, step=1, limit=4
    $region2: #{tpu_custom_call.1} parent=1 // loop_pre_header
      _
    $region3: #{tpu_custom_call.1} parent=1 // loop_header
      %s14 = sphi 0, %s18
      %p15 = scmp.ge.s32.totalorder %s14, 4
      %s21 = sphi 0, %s33
      %s22 = sphi 0, %s29
      %s23 = sphi 0, %s21
      %s24 = sphi 0, %s22
      %s25 = sphi 0, %s23
      %s26 = sphi 0, %s24
      %s38 = sphi 0, %s40
      %s41 = sphi 0, %s38
      %s42 = sphi 0, %s41
      %s58 = sphi 0, %s42
      %s62 = sphi 0, %s62
      %s64 = sphi 0, %s62
      %s65 = sphi 0, %s64
      %s79 = sphi 0, %s65
      %s87 = sphi 0, %s89
      %s90 = sphi 0, %s87
      %s91 = sphi 0, %s90
      %s107 = sphi 0, %s91
    $region4: #{tpu_custom_call.1} parent=1 // loop_header_branch
      %17 = sbr.rel (%p15) target = $region8
    $region5: #{tpu_custom_call.1} parent=1 // loop_body
      %s19 = ssub.s32 %s14, 1
      %s20 = ssub.s32 %s14, 2
      %s27 = sadd.s32 1, %s22
      %p28 = scmp.ge.s32.totalorder %s27, 1
      %s29 = scalar_select %p28, 0, %s27
      %s30 = sadd.s32 1, %s21
      %s31 = scalar_select %p28, %s30, %s21
      %p32 = scmp.ge.s32.totalorder %s31, 2
      %s33 = scalar_select %p32, 0, %s31
      %s34 = ssub.s32 %s21, %s33
      %s35 = ssub.s32 %s22, %s29
      %s36 = sor.u32 %s34, %s35
      %p37 = scmp.eq.s32.totalorder %s36, 0
      %s39 = sadd.s32 %s38, 1
      %s40 = scalar_select %p37, %s38, %s39
      %p43 = pneg %p37
      %p44 = scmp.eq.s32.totalorder %s14, 1
      %p45 = por %p43, %p44
      %p46 = scmp.ne.s32.totalorder %s38, %s41
      %p47 = scmp.eq.s32.totalorder %s14, 0
      %p48 = por %p46, %p47
      %p49 = scmp.ne.s32.totalorder %s38, %s41
      %p50 = scmp.eq.s32.totalorder %s19, 1
      %p51 = por %p49, %p50
      %p52 = scmp.ne.s32.totalorder %s41, %s42
      %p53 = scmp.eq.s32.totalorder %s19, 0
      %p54 = por %p52, %p53
      %p55 = scmp.ne.s32.totalorder %s41, %s42
      %p56 = scmp.eq.s32.totalorder %s20, 1
      %p57 = por %p55, %p56
      %p59 = scmp.ne.s32.totalorder %s42, %s58
      %p60 = scmp.eq.s32.totalorder %s20, 0
      %p61 = por %p59, %p60
      %s63 = sadd.s32 %s62, 1
      %p66 = scmp.eq.s32.totalorder %s14, 1
      %p67 = scmp.ne.s32.totalorder %s62, %s64
      %p68 = scmp.eq.s32.totalorder %s14, 0
      %p69 = por %p67, %p68
      %p70 = scmp.ne.s32.totalorder %s62, %s64
      %p71 = scmp.eq.s32.totalorder %s19, 1
      %p72 = por %p70, %p71
      %p73 = scmp.ne.s32.totalorder %s64, %s65
      %p74 = scmp.eq.s32.totalorder %s19, 0
      %p75 = por %p73, %p74
      %p76 = scmp.ne.s32.totalorder %s64, %s65
      %p77 = scmp.eq.s32.totalorder %s20, 1
      %p78 = por %p76, %p77
      %p80 = scmp.ne.s32.totalorder %s65, %s79
      %p81 = scmp.eq.s32.totalorder %s20, 0
      %p82 = por %p80, %p81
      %s83 = ssub.s32 %s21, %s33
      %s84 = ssub.s32 %s22, %s29
      %s85 = sor.u32 %s83, %s84
      %p86 = scmp.eq.s32.totalorder %s85, 0
      %s88 = sadd.s32 %s87, 1
      %s89 = scalar_select %p86, %s87, %s88
      %p92 = pneg %p86
      %p93 = scmp.eq.s32.totalorder %s14, 1
      %p94 = por %p92, %p93
      %p95 = scmp.ne.s32.totalorder %s87, %s90
      %p96 = scmp.eq.s32.totalorder %s14, 0
      %p97 = por %p95, %p96
      %p98 = scmp.ne.s32.totalorder %s87, %s90
      %p99 = scmp.eq.s32.totalorder %s19, 1
      %p100 = por %p98, %p99
      %p101 = scmp.ne.s32.totalorder %s90, %s91
      %p102 = scmp.eq.s32.totalorder %s19, 0
      %p103 = por %p101, %p102
      %p104 = scmp.ne.s32.totalorder %s90, %s91
      %p105 = scmp.eq.s32.totalorder %s20, 1
      %p106 = por %p104, %p105
      %p108 = scmp.ne.s32.totalorder %s91, %s107
      %p109 = scmp.eq.s32.totalorder %s20, 0
      %p110 = por %p108, %p109
      %p111 = scmp.le.s32.totalorder 1, %s14
      %p112 = scmp.lt.s32.totalorder %s14, 3
      %p113 = pnand %p111, %p112
      %p114 = pneg %p113
      // Predicated region
      $region9: #{tpu_custom_call.1} parent=5 // pred_check
        _
      $region10: #{tpu_custom_call.1} parent=5 // pred_check_branch
        %116 = sbr.rel (%p113) target = $region12
      $region11: #{tpu_custom_call.1} parent=5 // pred_region
        %s117 = ssub.s32 %s14, 1
        // Predicated region
        $region13: #{tpu_custom_call.1} parent=11 // pred_check
          %p118 = pneg %p75
        $region14: #{tpu_custom_call.1} parent=11 // pred_check_branch
          %120 = sbr.rel (%p118) target = $region16
        $region15: #{tpu_custom_call.1} parent=11 // pred_region
          _
        $region16: #{tpu_custom_call.1} parent=11 // pred_fallthru
          _
      $region12: #{tpu_custom_call.1} parent=5 // pred_fallthru
        _
      %p121 = scmp.lt.s32.totalorder %s14, 2
      // Predicated region
      $region17: #{tpu_custom_call.1} parent=5 // pred_check
        %p122 = pneg %p121
      $region18: #{tpu_custom_call.1} parent=5 // pred_check_branch
        %124 = sbr.rel (%p122) target = $region20
      $region19: #{tpu_custom_call.1} parent=5 // pred_region
        // Predicated region
        $region21: #{tpu_custom_call.1} parent=19 // pred_check
          %p125 = pneg %p48
        $region22: #{tpu_custom_call.1} parent=19 // pred_check_branch
          %127 = sbr.rel (%p125) target = $region24
        $region23: #{tpu_custom_call.1} parent=19 // pred_region
          %s128 = sand.u32 %s38, 1
          %s129 = scalar_lea.sflag [#allocation3], %s128
          %s130 = sand.u32 %s38, 1
          %s131 = smul.addr %s130, 8
          %s132 = scalar_lea.vmem [#allocation2], %s131
          %s133 = smul.u32 2, %s22
          %s135 = ssub.s32 128, 128
          %136 = vsyncadd %s129, %s135
          %s137 = smul.addr %s21, 2
          %s138 = sadd.s32 %s133, %s137
          %s139 = smul.addr %s138, 64
          %s140 = scalar_lea.hbm %s0, %s139
          %s142 = sshll.u32 %s132, 4
          %s143 = int_to_ptr.vmem [resolvable:$true] %s142
          %145 = dma.hbm_to_vmem [thread:$0]  %s140, 128, %s143, %s129
        $region24: #{tpu_custom_call.1} parent=19 // pred_fallthru
          _
      $region20: #{tpu_custom_call.1} parent=5 // pred_fallthru
        _
      %p146 = scmp.le.s32.totalorder 1, %s14
      %p147 = scmp.lt.s32.totalorder %s14, 3
      %p148 = pnand %p146, %p147
      %p149 = pneg %p148
      // Predicated region
      $region25: #{tpu_custom_call.1} parent=5 // pred_check
        _
      $region26: #{tpu_custom_call.1} parent=5 // pred_check_branch
        %151 = sbr.rel (%p148) target = $region28
      $region27: #{tpu_custom_call.1} parent=5 // pred_region
        %s152 = ssub.s32 %s14, 1
        %s153 = sand.u32 %s41, 1
        %s154 = scalar_lea.sflag [#allocation3], %s153
        %s155 = sand.u32 %s41, 1
        %s156 = smul.addr %s155, 8
        %s157 = scalar_lea.vmem [#allocation2], %s156
        // Predicated region
        $region29: #{tpu_custom_call.1} parent=27 // pred_check
          %p158 = pneg %p54
        $region30: #{tpu_custom_call.1} parent=27 // pred_check_branch
          %160 = sbr.rel (%p158) target = $region32
        $region31: #{tpu_custom_call.1} parent=27 // pred_region
          %161 = dma.done %s154, 128
        $region32: #{tpu_custom_call.1} parent=27 // pred_fallthru
          _
        %s162 = sand.u32 %s41, 1
        %s163 = scalar_lea.sflag [#allocation3], %s162
        %s164 = sand.u32 %s41, 1
        %s165 = smul.addr %s164, 8
        %s166 = scalar_lea.vmem [#allocation2], %s165
        %p167 = pneg %p54
        %p168 = pneg %p51
        %p169 = pneg %p75
        %p170 = pneg %p72
        %p171 = pneg %p103
        %p172 = pneg %p100
        %s173 = sand.u32 %s90, 1
        %s174 = scalar_lea.sflag [#allocation4], %s173
        %s175 = sand.u32 %s90, 1
        %s176 = smul.addr %s175, 2
        %s177 = scalar_lea.vmem [#allocation5], %s176
        %s178 = smul.u32 2, %s24
        %s179 = smul.u32 2, %s24
        %v180 = vld [vmem:[%s1] sm:$0x1]
        %v181 = vld [vmem:[%s157] sm:$0xff]
        %v183 = vcombine.high %v181, %v181
        %vm184 = vcmask 31744
        %v186 = vsel %vm184, %v180, 0
        %vm188 = vcmask 1043456
        %v189 = vsel %vm188, %v181, 0
        %v191 = vsel %vm188, %v183, 0
        %193 = vmatprep.subr.mxu0 %v191
        %194 = vmatpush1.msra.mxu0 %v189
        %195 = vmatprep.subr.mxu0 0.0
        %196 = vmatpush1.msra.mxu0 0.0
        %197 = vmatprep.subr.mxu0 0.0
        %198 = vmatpush1.msra.mxu0 0.0
        %199 = vmatprep.subr.mxu0 0.0
        %200 = vmatpush1.msra.mxu0 0.0
        %201 = vmatprep.subr.mxu0 0.0
        %202 = vmatpush1.msra.mxu0 0.0
        %203 = vmatprep.subr.mxu0 0.0
        %204 = vmatpush1.msra.mxu0 0.0
        %205 = vmatprep.subr.mxu0 0.0
        %206 = vmatpush1.msra.mxu0 0.0
        %207 = vmatprep.subr.mxu0 0.0
        %208 = vmatpush1.msra.mxu0 0.0
        %209 = vmatprep.subr.mxu0 0.0
        %210 = vmatpush1.msra.mxu0 0.0
        %211 = vmatprep.subr.mxu0 0.0
        %212 = vmatpush1.msra.mxu0 0.0
        %213 = vmatprep.subr.mxu0 0.0
        %214 = vmatpush1.msra.mxu0 0.0
        %215 = vmatprep.subr.mxu0 0.0
        %216 = vmatpush1.msra.mxu0 0.0
        %217 = vmatprep.subr.mxu0 0.0
        %218 = vmatpush1.msra.mxu0 0.0
        %219 = vmatprep.subr.mxu0 0.0
        %220 = vmatpush1.msra.mxu0 0.0
        %221 = vmatprep.subr.mxu0 0.0
        %222 = vmatpush1.msra.mxu0 0.0
        %223 = vmatprep.subr.mxu0 0.0
        %224 = vmatpush1.msra.mxu0 0.0
        %225 = vmatprep.subr.mxu0 0.0
        %226 = vmatpush1.msra.mxu0 0.0
        %227 = vmatprep.subr.mxu0 0.0
        %228 = vmatpush1.msra.mxu0 0.0
        %229 = vmatprep.subr.mxu0 0.0
        %230 = vmatpush1.msra.mxu0 0.0
        %231 = vmatprep.subr.mxu0 0.0
        %232 = vmatpush1.msra.mxu0 0.0
        %233 = vmatprep.subr.mxu0 0.0
        %234 = vmatpush1.msra.mxu0 0.0
        %235 = vmatprep.subr.mxu0 0.0
        %236 = vmatpush1.msra.mxu0 0.0
        %237 = vmatprep.subr.mxu0 0.0
        %238 = vmatpush1.msra.mxu0 0.0
        %239 = vmatprep.subr.mxu0 0.0
        %240 = vmatpush1.msra.mxu0 0.0
        %241 = vmatprep.subr.mxu0 0.0
        %242 = vmatpush1.msra.mxu0 0.0
        %243 = vmatprep.subr.mxu0 0.0
        %244 = vmatpush1.msra.mxu0 0.0
        %245 = vmatprep.subr.mxu0 0.0
        %246 = vmatpush1.msra.mxu0 0.0
        %247 = vmatprep.subr.mxu0 0.0
        %248 = vmatpush1.msra.mxu0 0.0
        %249 = vmatprep.subr.mxu0 0.0
        %250 = vmatpush1.msra.mxu0 0.0
        %251 = vmatprep.subr.mxu0 0.0
        %252 = vmatpush1.msra.mxu0 0.0
        %253 = vmatprep.subr.mxu0 0.0
        %254 = vmatpush1.msra.mxu0 0.0
        %255 = vmatprep.subr.mxu0 0.0
        %256 = vmatpush1.msra.mxu0 0.0
        %257 = vmatprep.mubr.f32.mxu0 0.0
        %258 = vmatmul.mubr.f32.gmra.mrb[0].mxu0 %v186
        %v259 = vpop.f32.mrb[0].mxu0
        %v260 = vadd.f32 0.0, %v259
        %v261 = vpop.f32.mrb[0].mxu0
        %v262 = vadd.f32 0.0, %v261
        %263 = vdwg.mxu0
        %v266 = vcombine.low %v260, %v262
        %v268 = vunpack.c.l.s4 1966171168
        %v269 = vunpack.c.0.s8 %v268
        %v270 = vlaneseq
        %v271 = vshrl.u32 %v270, 7
        %v272 = vsub.s32 %v269, %v271
        %v273 = vrot.slane %v266, %v272
        %v275 = vunpack.c.l.s4 1966171168
        %v276 = vunpack.c.0.s8 %v275
        %v277 = vlaneseq
        %v278 = vshrl.u32 %v277, 7
        %v279 = vsub.s32 %v276, %v278
        %v280 = vrot.slane %v273, %v279
        %v282 = vlaneseq
        %vm283 = vcmp.ge.s32.totalorder %v282, 0
        %vm284 = vcmp.lt.s32.totalorder %v282, 256
        %vm285 = vmand %vm283, %vm284
        %286 = vst.msk [vmem:[%s177] sm:$0x3] %vm285, %v280
        %s287 = sand.u32 %s90, 1
        %s288 = scalar_lea.sflag [#allocation4], %s287
        %s289 = sand.u32 %s90, 1
        %s290 = smul.addr %s289, 2
        %s291 = scalar_lea.vmem [#allocation5], %s290
        // Predicated region
        $region33: #{tpu_custom_call.1} parent=27 // pred_check
          %p292 = pneg %p100
        $region34: #{tpu_custom_call.1} parent=27 // pred_check_branch
          %294 = sbr.rel (%p292) target = $region36
        $region35: #{tpu_custom_call.1} parent=27 // pred_region
          %s295 = smul.u32 2, %s24
          %s297 = ssub.s32 32, 32
          %298 = vsyncadd %s288, %s297
          %s299 = smul.addr %s23, 2
          %s300 = sadd.s32 %s295, %s299
          %s301 = smul.addr %s300, 16
          %s302 = scalar_lea.hbm %s2, %s301
          %s304 = sshll.u32 %s291, 4
          %s305 = int_to_ptr.vmem [resolvable:$true] %s304
          %307 = dma.vmem_to_hbm [thread:$0]  %s305, 32, %s302, %s288
        $region36: #{tpu_custom_call.1} parent=27 // pred_fallthru
          _
      $region28: #{tpu_custom_call.1} parent=5 // pred_fallthru
        _
      %p308 = scmp.le.s32.totalorder 2, %s14
      // Predicated region
      $region37: #{tpu_custom_call.1} parent=5 // pred_check
        %p309 = pneg %p308
      $region38: #{tpu_custom_call.1} parent=5 // pred_check_branch
        %311 = sbr.rel (%p309) target = $region40
      $region39: #{tpu_custom_call.1} parent=5 // pred_region
        %s312 = ssub.s32 %s14, 2
        // Predicated region
        $region41: #{tpu_custom_call.1} parent=39 // pred_check
          %p313 = pneg %p106
        $region42: #{tpu_custom_call.1} parent=39 // pred_check_branch
          %315 = sbr.rel (%p313) target = $region44
        $region43: #{tpu_custom_call.1} parent=39 // pred_region
          %s316 = sand.u32 %s91, 1
          %s317 = scalar_lea.sflag [#allocation4], %s316
          %s318 = sand.u32 %s91, 1
          %s319 = smul.addr %s318, 2
          %s320 = scalar_lea.vmem [#allocation5], %s319
          %321 = dma.done %s317, 32
        $region44: #{tpu_custom_call.1} parent=39 // pred_fallthru
          _
      $region40: #{tpu_custom_call.1} parent=5 // pred_fallthru
        _
    $region6: #{tpu_custom_call.1} parent=1 // loop_footer
      %s18 = sadd.s32 1, %s14
    $region7: #{tpu_custom_call.1} parent=1 // loop_footer_branch
      %13 = sbr.rel target = $region3
    $region8: #{tpu_custom_call.1} parent=1 // loop_exit
      _
    %322 = vsyncpa [#allocation3], 1
    %s323 = scalar_lea.sflag [#allocation3], 1
    %324 = vsyncpa %s323, 1
    %325 = vsyncpa [#allocation4], 1
    %s326 = scalar_lea.sflag [#allocation4], 1
    %327 = vsyncpa %s326, 1

</llo_original>
